<compile_context>
chip_gen: v7x
topology: tpu7x:2x2x1
jax: 0.10.0
libtpu: 0.0.40
codegen_flags: <defaults>
</compile_context>

<pallas_src>
import jax
import jax.numpy as jnp
from jax import lax
from jax.experimental import pallas as pl
from jax.experimental.pallas import tpu as pltpu


def _resblock_kernel(p_ref, w_ref, b_ref, a_ref, o_ref):
    # p_ref: (9*Cin, TL)      bf16 im2col patch tile (rows: tap-major, cin-minor)
    # w_ref: (2*Cp, 9*Cin)    bf16 combined weights (conv3x3 | shortcut-at-center-tap)
    # b_ref: (2*Cp, 1)        f32 combined folded BN biases
    # a_ref: (1, 1)           f32 PReLU slope (SMEM scalar)
    # o_ref: (Cp, TL)
    cp = o_ref.shape[0]

    # One MXU matmul produces both the main-branch and shortcut pre-activations.
    yz = jnp.dot(w_ref[...], p_ref[...],
                 preferred_element_type=jnp.float32)         # (2*Cp, TL) f32
    yz = yz + b_ref[...]                                      # bias broadcast (lanes)

    y = yz[:cp, :]                                            # conv3x3 + BN1 (sublane-tile aligned split)
    sc = yz[cp:, :]                                           # shortcut conv1x1 + BN

    # PReLU (single slope), f32 epilogue, then residual add.
    a = a_ref[0, 0]
    y = jnp.where(y > 0, y, a * y)

    o_ref[...] = (y + sc).astype(o_ref.dtype)


def _pick_lane_tile(L):
    """Largest lane-tile (multiple of 128) that divides L and keeps >=2 grid steps."""
    if L % 128 != 0 or L <= 256:
        return L
    for t in (2048, 1024, 512, 256, 128):
        if L % t == 0 and L // t >= 2:
            return t
    return L


def simple_res_block(x_nchw, w1, bn1, wsc, bnsc, prelu_a):
    """Pallas forward. x_nchw: (N, Cin, H, W). Returns (N, Cout, H, W). stride=1 only."""
    N, Cin, H, W = x_nchw.shape
    Cout = w1.shape[0]
    L = N * H * W
    eps = 1e-5

    # --- im2col (glue): pad + 9 shifted slices, flattened so lanes = N*H*W ---
    xpad = jnp.pad(x_nchw, ((0, 0), (0, 0), (1, 1), (1, 1)))        # (N, Cin, H+2, W+2)
    taps = jnp.stack(
        [xpad[:, :, dy:dy + H, dx:dx + W] for dy in range(3) for dx in range(3)],
        axis=0)                                                      # (9, N, Cin, H, W)
    patches = jnp.transpose(taps, (0, 2, 1, 3, 4)).reshape(9 * Cin, L)
    patches = patches.astype(jnp.bfloat16)                           # bf16 MXU path

    # --- fold BN (inference) into per-channel scale/bias ---
    def fold_bn(bn):
        gamma, beta, mean, var = bn
        s = gamma / jnp.sqrt(var + eps)
        b = beta - mean * s
        return s.astype(jnp.float32), b.astype(jnp.float32)

    s1, b1 = fold_bn(bn1)
    ssc, bsc = fold_bn(bnsc)

    # Pad Cout up to a multiple of 8 so the split of the combined GEMM result is
    # sublane-tile aligned inside the kernel.
    Cp = max(8, ((Cout + 7) // 8) * 8)

    # (Cout, Cin, 3, 3) -> (Cout, 3, 3, Cin) -> (Cout, 9*Cin); column = tap*Cin + cin
    # (matches the patch row ordering). BN1 scale folded into the weights.
    w1_mat = jnp.transpose(w1, (0, 2, 3, 1)).reshape(Cout, 9 * Cin) * s1[:, None]

    # Shortcut conv1x1 (BN scale folded) embedded at the center-tap columns
    # (dy=1, dx=1 -> columns 4*Cin .. 5*Cin), zeros elsewhere.
    wsc_mat = wsc[:, :, 0, 0] * ssc[:, None]                          # (Cout, Cin)
    wsc_full = jnp.zeros((Cout, 9 * Cin), jnp.float32)
    wsc_full = wsc_full.at[:, 4 * Cin:5 * Cin].set(wsc_mat)

    def pad_rows(m, rows):
        return jnp.pad(m, ((0, rows - m.shape[0]),) + ((0, 0),) * (m.ndim - 1))

    w_comb = jnp.concatenate(
        [pad_rows(w1_mat, Cp), pad_rows(wsc_full, Cp)], axis=0).astype(jnp.bfloat16)
    b_comb = jnp.concatenate(
        [pad_rows(b1.reshape(Cout, 1), Cp), pad_rows(bsc.reshape(Cout, 1), Cp)],
        axis=0).astype(jnp.float32)                                   # (2*Cp, 1)

    a = jnp.asarray(prelu_a, jnp.float32).reshape(1, 1)

    TL = _pick_lane_tile(L)

    out_flat = pl.pallas_call(
        _resblock_kernel,
        out_shape=jax.ShapeDtypeStruct((Cp, L), x_nchw.dtype),
        grid_spec=pltpu.PrefetchScalarGridSpec(
            num_scalar_prefetch=0,
            grid=(L // TL,),
            in_specs=[
                pl.BlockSpec((9 * Cin, TL), lambda i: (0, i)),
                pl.BlockSpec((2 * Cp, 9 * Cin), lambda i: (0, 0)),
                pl.BlockSpec((2 * Cp, 1), lambda i: (0, 0)),
                pl.BlockSpec(memory_space=pltpu.MemorySpace.SMEM),
            ],
            out_specs=pl.BlockSpec((Cp, TL), lambda i: (0, i)),
        ),
        compiler_params=pltpu.CompilerParams(
            dimension_semantics=("parallel",),
            vmem_limit_bytes=32 * 1024 * 1024),
    )(patches, w_comb, b_comb, a)

    # (Cp, N*H*W) -> drop channel padding -> (N, Cout, H, W)
    return jnp.transpose(out_flat[:Cout].reshape(Cout, N, H, W), (1, 0, 2, 3))


def reference_forward(x, w1, bn1, wsc, bnsc, prelu_a):
    """Pure-JAX reference matching PyTorch SimpleResBlock (eval BN, f32)."""
    eps = 1e-5
    dn = ('NCHW', 'OIHW', 'NCHW')

    def bn_apply(y, bn):
        gamma, beta, mean, var = bn
        rs = lambda t: t.reshape(1, -1, 1, 1)
        return (y - rs(mean)) / jnp.sqrt(rs(var) + eps) * rs(gamma) + rs(beta)

    y = lax.conv_general_dilated(x, w1, (1, 1), [(1, 1), (1, 1)],
                                 dimension_numbers=dn)
    y = bn_apply(y, bn1)
    y = jnp.where(y > 0, y, prelu_a * y)

    s = lax.conv_general_dilated(x, wsc, (1, 1), [(0, 0), (0, 0)],
                                 dimension_numbers=dn)
    s = bn_apply(s, bnsc)
    return y + s


if __name__ == "__main__":
    N, Cin, Cout, H, W = 2, 4, 8, 16, 16
    key = jax.random.PRNGKey(0)
    keys = jax.random.split(key, 10)

    x = jax.random.normal(keys[0], (N, Cin, H, W), jnp.float32)
    w1 = jax.random.normal(keys[1], (Cout, Cin, 3, 3), jnp.float32) * 0.1
    wsc = jax.random.normal(keys[2], (Cout, Cin, 1, 1), jnp.float32) * 0.1

    bn1 = (jax.random.uniform(keys[3], (Cout,), jnp.float32, 0.5, 1.5),   # gamma
           jax.random.normal(keys[4], (Cout,), jnp.float32) * 0.1,        # beta
           jax.random.normal(keys[5], (Cout,), jnp.float32) * 0.1,        # running_mean
           jax.random.uniform(keys[6], (Cout,), jnp.float32, 0.5, 1.5))   # running_var
    bnsc = (jax.random.uniform(keys[7], (Cout,), jnp.float32, 0.5, 1.5),
            jax.random.normal(keys[8], (Cout,), jnp.float32) * 0.1,
            jax.random.normal(keys[9], (Cout,), jnp.float32) * 0.1,
            jnp.ones((Cout,), jnp.float32))
    prelu_a = 0.25  # PyTorch nn.PReLU() default

    out = simple_res_block(x, w1, bn1, wsc, bnsc, prelu_a)
    out = jax.block_until_ready(out)

    ref = reference_forward(x, w1, bn1, wsc, bnsc, prelu_a)
    assert out.shape == (N, Cout, H, W)
    # bf16 matmul operands with f32 accumulation -> relaxed tolerance vs f32 reference.
    assert jnp.allclose(out, ref, rtol=5e-2, atol=5e-2), "mismatch vs reference"

    print("KERNEL_OK")
</pallas_src>

<mosaic_0001>
module attributes {stable_mosaic.version = 11 : i64} {
  func.func @_resblock_kernel(%arg0: i32, %arg1: memref<36x256xbf16, #tpu.memory_space<vmem>>, %arg2: memref<16x36xbf16, #tpu.memory_space<vmem>>, %arg3: memref<16x1xf32, #tpu.memory_space<vmem>>, %arg4: memref<1x1xf32, #tpu.memory_space<smem>>, %arg5: memref<8x256xf32, #tpu.memory_space<vmem>>) attributes {dimension_semantics = [#tpu.dimension_semantics<parallel>], iteration_bounds = array<i64: 2>, scalar_prefetch = 0 : i64, scratch_operands = 0 : i64, tpu.core_type = #tpu.core_type<tc>, window_params = [{transform_indices = @transform_0, window_bounds = array<i64: 36, 256>}, {pipeline_mode = #tpu.pipeline_mode<synchronous>, transform_indices = @transform_1, window_bounds = array<i64: 16, 36>}, {pipeline_mode = #tpu.pipeline_mode<synchronous>, transform_indices = @transform_2, window_bounds = array<i64: 16, 1>}, {transform_indices = @transform_3, window_bounds = array<i64: 1, 1>}, {transform_indices = @transform_4, window_bounds = array<i64: 8, 256>}]} {
    %c0 = arith.constant 0 : index
    %c0_0 = arith.constant 0 : index
    %0 = vector.load %arg2[%c0, %c0_0] : memref<16x36xbf16, #tpu.memory_space<vmem>>, vector<16x36xbf16>
    %c0_1 = arith.constant 0 : index
    %c0_2 = arith.constant 0 : index
    %1 = vector.load %arg1[%c0_1, %c0_2] : memref<36x256xbf16, #tpu.memory_space<vmem>>, vector<36x256xbf16>
    %cst = arith.constant dense<0.000000e+00> : vector<16x256xf32>
    %2 = tpu.matmul %0, %1, %cst {dimension_numbers = #tpu.dot_dimension_numbers<[1], [0], [0], [1], [0, 0, 1, 1], [], []>} : vector<16x36xbf16>, vector<36x256xbf16>, vector<16x256xf32> -> vector<16x256xf32>
    %c0_3 = arith.constant 0 : index
    %c0_4 = arith.constant 0 : index
    %3 = vector.load %arg3[%c0_3, %c0_4] : memref<16x1xf32, #tpu.memory_space<vmem>>, vector<16x1xf32>
    %4 = vector.broadcast %3 : vector<16x1xf32> to vector<16x256xf32>
    %5 = arith.addf %2, %4 : vector<16x256xf32>
    %6 = vector.extract_strided_slice %5 {offsets = [0, 0], sizes = [8, 256], strides = [1, 1]} : vector<16x256xf32> to vector<8x256xf32>
    %7 = vector.extract_strided_slice %5 {offsets = [8, 0], sizes = [8, 256], strides = [1, 1]} : vector<16x256xf32> to vector<8x256xf32>
    %c0_5 = arith.constant 0 : index
    %c0_6 = arith.constant 0 : index
    %8 = memref.load %arg4[%c0_5, %c0_6] : memref<1x1xf32, #tpu.memory_space<smem>>
    %cst_7 = arith.constant 0.000000e+00 : f32
    %9 = vector.broadcast %cst_7 : f32 to vector<8x256xf32>
    %10 = arith.cmpf ogt, %6, %9 : vector<8x256xf32>
    %11 = vector.broadcast %8 : f32 to vector<8x256xf32>
    %12 = arith.mulf %11, %6 : vector<8x256xf32>
    %13 = arith.select %10, %6, %12 : vector<8x256xi1>, vector<8x256xf32>
    %14 = arith.addf %13, %7 : vector<8x256xf32>
    %c0_8 = arith.constant 0 : index
    %c0_9 = arith.constant 0 : index
    %15 = vector.load %arg5[%c0_8, %c0_9] : memref<8x256xf32, #tpu.memory_space<vmem>>, vector<8x256xf32>
    tpu.vector_store %arg5[%c0_8, %c0_9], %14 {strides = array<i32>} : memref<8x256xf32, #tpu.memory_space<vmem>>, vector<8x256xf32>,
    return
  }
  func.func @transform_0(%arg0: i32) -> (i32, i32) {
    %c0_i32 = arith.constant 0 : i32
    %c0_i32_0 = arith.constant 0 : i32
    return %c0_i32, %arg0 : i32, i32
  }
  func.func @transform_1(%arg0: i32) -> (i32, i32) {
    %c0_i32 = arith.constant 0 : i32
    %c0_i32_0 = arith.constant 0 : i32
    %c0_i32_1 = arith.constant 0 : i32
    return %c0_i32, %c0_i32_0 : i32, i32
  }
  func.func @transform_2(%arg0: i32) -> (i32, i32) {
    %c0_i32 = arith.constant 0 : i32
    %c0_i32_0 = arith.constant 0 : i32
    %c0_i32_1 = arith.constant 0 : i32
    return %c0_i32, %c0_i32_0 : i32, i32
  }
  func.func @transform_3(%arg0: i32) -> (i32, i32) {
    %c0_i32 = arith.constant 0 : i32
    %c0_i32_0 = arith.constant 0 : i32
    %c0_i32_1 = arith.constant 0 : i32
    return %c0_i32, %c0_i32_0 : i32, i32
  }
  func.func @transform_4(%arg0: i32) -> (i32, i32) {
    %c0_i32 = arith.constant 0 : i32
    %c0_i32_0 = arith.constant 0 : i32
    return %c0_i32, %arg0 : i32, i32
  }
}

</mosaic_0001>

<llo_original>
// kernel: tpu_custom_call.1
$region0: #{tpu_custom_call.1}
  #allocation0 [shape = 'u32[]', space=smem, size = 0x4, offset = 0x4, fixed_abs, tag = 'smem constant byte address 0x4 - core index']
  #allocation1 [shape = 'u32[144,128]{1,0:T(1,128)}', space=vmem, size = 0x12000, scoped, tag = 'internal scratch']
  #allocation2 [shape = 'f32[1,1]{1,0:T(1,128)S(6)}', space=smem, size = 0x200, scoped, tag = 'scoped memory for tpu_custom_call.1']
  %s0 = inlined_call_operand.hbm [shape: bf16[36,512], index: 0, kind: input, shape index: {}]
  %s1 = inlined_call_operand.vmem [shape: bf16[16,36], index: 1, kind: input, shape index: {}]
  %s2 = inlined_call_operand.vmem [shape: f32[16,1], index: 2, kind: input, shape index: {}]
  %s3 = inlined_call_operand.<no memory space> [shape: f32[1,1], index: 3, kind: input, shape index: {}]
  %s4 = inlined_call_operand.hbm [shape: f32[8,512], index: 4, kind: output, shape index: {}]
  %s5 = sld [smem:[#allocation0]]
  $region53: #{tpu_custom_call.1} parent=0
    _
  %s7 = ssub.s32 1, %s5
  %s8 = scalar_select 0, %s7, %s5
  %9 = sst [smem:[#allocation2]] %s3
  $region1: #{tpu_custom_call.1} parent=0
    #allocation3 [shape = 'u8[40960]{0}', space=vmem, size = 0xa000, scoped, tag = 'input window, operand 0']
    #allocation4 [shape = 's32[2]{0}', space=sflag, size = 0x8, scoped, tag = 'scoped memory for tpu_custom_call.1']
    #allocation5 [shape = 's32[2]{0}', space=sflag, size = 0x8, scoped, tag = 'scoped memory for tpu_custom_call.1']
    #allocation6 [shape = 'u8[16384]{0}', space=vmem, size = 0x4000, scoped, tag = 'output window, operand 0']
    %10 = vsyncpa [#allocation4], 0
    %s11 = scalar_lea.sflag [#allocation4], 1
    %12 = vsyncpa %s11, 0
    %13 = vsyncpa [#allocation5], 0
    %s14 = scalar_lea.sflag [#allocation5], 1
    %15 = vsyncpa %s14, 0
    loop: start=0, step=1, limit=4
    $region2: #{tpu_custom_call.1} parent=1 // loop_pre_header
      _
    $region3: #{tpu_custom_call.1} parent=1 // loop_header
      %s17 = sphi 0, %s21
      %p18 = scmp.ge.s32.totalorder %s17, 4
      %s27 = sphi 0, %s29
      %s30 = sphi 0, %s27
      %s31 = sphi 0, %s30
      %s47 = sphi 0, %s31
      %s51 = sphi 0, %s51
      %s53 = sphi 0, %s51
      %s54 = sphi 0, %s53
      %s68 = sphi 0, %s54
      %s72 = sphi 0, %s72
      %s74 = sphi 0, %s72
      %s75 = sphi 0, %s74
      %s89 = sphi 0, %s75
      %s93 = sphi 0, %s93
      %s95 = sphi 0, %s93
      %s96 = sphi 0, %s95
      %s110 = sphi 0, %s96
      %s116 = sphi 0, %s118
      %s119 = sphi 0, %s116
      %s120 = sphi 0, %s119
      %s136 = sphi 0, %s120
    $region4: #{tpu_custom_call.1} parent=1 // loop_header_branch
      %20 = sbr.rel (%p18) target = $region8
    $region5: #{tpu_custom_call.1} parent=1 // loop_body
      %s22 = ssub.s32 %s17, 1
      %s23 = ssub.s32 %s17, 2
      %s24 = sadd.s32 %s17, 1
      %s25 = ssub.s32 %s17, %s24
      %p26 = scmp.eq.s32.totalorder %s25, 0
      %s28 = sadd.s32 %s27, 1
      %s29 = scalar_select %p26, %s27, %s28
      %p32 = pneg %p26
      %p33 = scmp.eq.s32.totalorder %s17, 1
      %p34 = por %p32, %p33
      %p35 = scmp.ne.s32.totalorder %s27, %s30
      %p36 = scmp.eq.s32.totalorder %s17, 0
      %p37 = por %p35, %p36
      %p38 = scmp.ne.s32.totalorder %s27, %s30
      %p39 = scmp.eq.s32.totalorder %s22, 1
      %p40 = por %p38, %p39
      %p41 = scmp.ne.s32.totalorder %s30, %s31
      %p42 = scmp.eq.s32.totalorder %s22, 0
      %p43 = por %p41, %p42
      %p44 = scmp.ne.s32.totalorder %s30, %s31
      %p45 = scmp.eq.s32.totalorder %s23, 1
      %p46 = por %p44, %p45
      %p48 = scmp.ne.s32.totalorder %s31, %s47
      %p49 = scmp.eq.s32.totalorder %s23, 0
      %p50 = por %p48, %p49
      %s52 = sadd.s32 %s51, 1
      %p55 = scmp.eq.s32.totalorder %s17, 1
      %p56 = scmp.ne.s32.totalorder %s51, %s53
      %p57 = scmp.eq.s32.totalorder %s17, 0
      %p58 = por %p56, %p57
      %p59 = scmp.ne.s32.totalorder %s51, %s53
      %p60 = scmp.eq.s32.totalorder %s22, 1
      %p61 = por %p59, %p60
      %p62 = scmp.ne.s32.totalorder %s53, %s54
      %p63 = scmp.eq.s32.totalorder %s22, 0
      %p64 = por %p62, %p63
      %p65 = scmp.ne.s32.totalorder %s53, %s54
      %p66 = scmp.eq.s32.totalorder %s23, 1
      %p67 = por %p65, %p66
      %p69 = scmp.ne.s32.totalorder %s54, %s68
      %p70 = scmp.eq.s32.totalorder %s23, 0
      %p71 = por %p69, %p70
      %s73 = sadd.s32 %s72, 1
      %p76 = scmp.eq.s32.totalorder %s17, 1
      %p77 = scmp.ne.s32.totalorder %s72, %s74
      %p78 = scmp.eq.s32.totalorder %s17, 0
      %p79 = por %p77, %p78
      %p80 = scmp.ne.s32.totalorder %s72, %s74
      %p81 = scmp.eq.s32.totalorder %s22, 1
      %p82 = por %p80, %p81
      %p83 = scmp.ne.s32.totalorder %s74, %s75
      %p84 = scmp.eq.s32.totalorder %s22, 0
      %p85 = por %p83, %p84
      %p86 = scmp.ne.s32.totalorder %s74, %s75
      %p87 = scmp.eq.s32.totalorder %s23, 1
      %p88 = por %p86, %p87
      %p90 = scmp.ne.s32.totalorder %s75, %s89
      %p91 = scmp.eq.s32.totalorder %s23, 0
      %p92 = por %p90, %p91
      %s94 = sadd.s32 %s93, 1
      %p97 = scmp.eq.s32.totalorder %s17, 1
      %p98 = scmp.ne.s32.totalorder %s93, %s95
      %p99 = scmp.eq.s32.totalorder %s17, 0
      %p100 = por %p98, %p99
      %p101 = scmp.ne.s32.totalorder %s93, %s95
      %p102 = scmp.eq.s32.totalorder %s22, 1
      %p103 = por %p101, %p102
      %p104 = scmp.ne.s32.totalorder %s95, %s96
      %p105 = scmp.eq.s32.totalorder %s22, 0
      %p106 = por %p104, %p105
      %p107 = scmp.ne.s32.totalorder %s95, %s96
      %p108 = scmp.eq.s32.totalorder %s23, 1
      %p109 = por %p107, %p108
      %p111 = scmp.ne.s32.totalorder %s96, %s110
      %p112 = scmp.eq.s32.totalorder %s23, 0
      %p113 = por %p111, %p112
      %s114 = ssub.s32 %s17, %s24
      %p115 = scmp.eq.s32.totalorder %s114, 0
      %s117 = sadd.s32 %s116, 1
      %s118 = scalar_select %p115, %s116, %s117
      %p121 = pneg %p115
      %p122 = scmp.eq.s32.totalorder %s17, 1
      %p123 = por %p121, %p122
      %p124 = scmp.ne.s32.totalorder %s116, %s119
      %p125 = scmp.eq.s32.totalorder %s17, 0
      %p126 = por %p124, %p125
      %p127 = scmp.ne.s32.totalorder %s116, %s119
      %p128 = scmp.eq.s32.totalorder %s22, 1
      %p129 = por %p127, %p128
      %p130 = scmp.ne.s32.totalorder %s119, %s120
      %p131 = scmp.eq.s32.totalorder %s22, 0
      %p132 = por %p130, %p131
      %p133 = scmp.ne.s32.totalorder %s119, %s120
      %p134 = scmp.eq.s32.totalorder %s23, 1
      %p135 = por %p133, %p134
      %p137 = scmp.ne.s32.totalorder %s120, %s136
      %p138 = scmp.eq.s32.totalorder %s23, 0
      %p139 = por %p137, %p138
      %p140 = scmp.le.s32.totalorder 1, %s17
      %p141 = scmp.lt.s32.totalorder %s17, 3
      %p142 = pnand %p140, %p141
      %p143 = pneg %p142
      // Predicated region
      $region9: #{tpu_custom_call.1} parent=5 // pred_check
        _
      $region10: #{tpu_custom_call.1} parent=5 // pred_check_branch
        %145 = sbr.rel (%p142) target = $region12
      $region11: #{tpu_custom_call.1} parent=5 // pred_region
        %s146 = ssub.s32 %s17, 1
        // Predicated region
        $region13: #{tpu_custom_call.1} parent=11 // pred_check
          %p147 = pneg %p64
        $region14: #{tpu_custom_call.1} parent=11 // pred_check_branch
          %149 = sbr.rel (%p147) target = $region16
        $region15: #{tpu_custom_call.1} parent=11 // pred_region
          _
        $region16: #{tpu_custom_call.1} parent=11 // pred_fallthru
          _
        // Predicated region
        $region17: #{tpu_custom_call.1} parent=11 // pred_check
          %p150 = pneg %p85
        $region18: #{tpu_custom_call.1} parent=11 // pred_check_branch
          %152 = sbr.rel (%p150) target = $region20
        $region19: #{tpu_custom_call.1} parent=11 // pred_region
          _
        $region20: #{tpu_custom_call.1} parent=11 // pred_fallthru
          _
        // Predicated region
        $region21: #{tpu_custom_call.1} parent=11 // pred_check
          %p153 = pneg %p106
        $region22: #{tpu_custom_call.1} parent=11 // pred_check_branch
          %155 = sbr.rel (%p153) target = $region24
        $region23: #{tpu_custom_call.1} parent=11 // pred_region
          _
        $region24: #{tpu_custom_call.1} parent=11 // pred_fallthru
          _
      $region12: #{tpu_custom_call.1} parent=5 // pred_fallthru
        _
      %p156 = scmp.lt.s32.totalorder %s17, 2
      // Predicated region
      $region25: #{tpu_custom_call.1} parent=5 // pred_check
        %p157 = pneg %p156
      $region26: #{tpu_custom_call.1} parent=5 // pred_check_branch
        %159 = sbr.rel (%p157) target = $region28
      $region27: #{tpu_custom_call.1} parent=5 // pred_region
        // Predicated region
        $region29: #{tpu_custom_call.1} parent=27 // pred_check
          %p160 = pneg %p37
        $region30: #{tpu_custom_call.1} parent=27 // pred_check_branch
          %162 = sbr.rel (%p160) target = $region32
        $region31: #{tpu_custom_call.1} parent=27 // pred_region
          %s163 = sand.u32 %s27, 1
          %s164 = scalar_lea.sflag [#allocation4], %s163
          %s165 = sand.u32 %s27, 1
          %s166 = smul.addr %s165, 40
          %s167 = scalar_lea.vmem [#allocation3], %s166
          %s168 = smul.u32 2, %s17
          %s170 = ssub.s32 640, 640
          %171 = vsyncadd %s164, %s170
          %s172 = smul.addr %s168, 64
          %s173 = scalar_lea.hbm %s0, %s172
          %s174 = sshll.u32 %s167, 4
          %s175 = int_to_ptr.vmem [resolvable:$true] %s174
          %180 = dma.hbm_to_vmem [thread:$0]  %s173, 640, %s175, %s164, 256, 128, 8
        $region32: #{tpu_custom_call.1} parent=27 // pred_fallthru
          _
      $region28: #{tpu_custom_call.1} parent=5 // pred_fallthru
        _
      %p181 = scmp.le.s32.totalorder 1, %s17
      %p182 = scmp.lt.s32.totalorder %s17, 3
      %p183 = pnand %p181, %p182
      %p184 = pneg %p183
      // Predicated region
      $region33: #{tpu_custom_call.1} parent=5 // pred_check
        _
      $region34: #{tpu_custom_call.1} parent=5 // pred_check_branch
        %186 = sbr.rel (%p183) target = $region36
      $region35: #{tpu_custom_call.1} parent=5 // pred_region
        %s187 = ssub.s32 %s17, 1
        %s188 = sand.u32 %s30, 1
        %s189 = scalar_lea.sflag [#allocation4], %s188
        %s190 = sand.u32 %s30, 1
        %s191 = smul.addr %s190, 40
        %s192 = scalar_lea.vmem [#allocation3], %s191
        // Predicated region
        $region37: #{tpu_custom_call.1} parent=35 // pred_check
          %p193 = pneg %p43
        $region38: #{tpu_custom_call.1} parent=35 // pred_check_branch
          %195 = sbr.rel (%p193) target = $region40
        $region39: #{tpu_custom_call.1} parent=35 // pred_region
          %196 = dma.done %s189, 640
        $region40: #{tpu_custom_call.1} parent=35 // pred_fallthru
          _
        %s197 = sand.u32 %s30, 1
        %s198 = scalar_lea.sflag [#allocation4], %s197
        %s199 = sand.u32 %s30, 1
        %s200 = smul.addr %s199, 40
        %s201 = scalar_lea.vmem [#allocation3], %s200
        %p202 = pneg %p43
        %p203 = pneg %p40
        %p204 = pneg %p64
        %p205 = pneg %p61
        %p206 = pneg %p85
        %p207 = pneg %p82
        %p208 = pneg %p106
        %p209 = pneg %p103
        %p210 = pneg %p132
        %p211 = pneg %p129
        %s212 = sand.u32 %s119, 1
        %s213 = scalar_lea.sflag [#allocation5], %s212
        %s214 = sand.u32 %s119, 1
        %s215 = smul.addr %s214, 16
        %s216 = scalar_lea.vmem [#allocation6], %s215
        %s217 = smul.u32 2, %s22
        %s218 = smul.u32 2, %s22
        %v220 = vld [vmem:[%s1] sm:$0xf]
        %v221 = vld [vmem:[%s1 + $0x4] sm:$0xf]
        %v222 = vld [vmem:[%s192] sm:$0xff]
        %v223 = vld [vmem:[%s192 + $0x8] sm:$0xff]
        %v224 = vld [vmem:[%s192 + $0x10] sm:$0xff]
        %v225 = vld [vmem:[%s192 + $0x18] sm:$0xff]
        %v226 = vld [vmem:[%s192 + $0x20] sm:$0x33]
        %v227 = vld [vmem:[%s2] sm:$0xff]
        %v228 = vld [vmem:[%s2 + $0x8] sm:$0xff]
        %230 = vset.pattern.permute.xlu0 0
        %231 = vperm.xlu0 %230, %v227
        %v232 = vpop.permute.xlu0 %231
        %235 = vset.pattern.permute.xlu0 0
        %236 = vperm.xlu0 %235, %v228
        %v237 = vpop.permute.xlu0 %236
        %v241 = vunpack.c.l.b16 %v220
        %v242 = vunpack.c.l.b16 %v221
        %v243 = vpack.c.b16 %v242, %v241
        %v249 = vunpack.c.l.b16 %v222
        %v250 = vunpack.c.h.b16 %v222
        %v251 = vunpack.c.l.b16 %v223
        %v252 = vunpack.c.h.b16 %v223
        %v253 = vunpack.c.l.b16 %v224
        %v254 = vunpack.c.h.b16 %v224
        %v255 = vunpack.c.l.b16 %v225
        %v256 = vunpack.c.h.b16 %v225
        %v257 = vunpack.c.l.b16 %v226
        %v258 = vunpack.c.h.b16 %v226
        %v259 = vpack.c.b16 %v251, %v249
        %v260 = vpack.c.b16 %v252, %v250
        %v261 = vpack.c.b16 %v255, %v253
        %v262 = vpack.c.b16 %v256, %v254
        %v263 = vpack.c.b16 %v257, %v257
        %v264 = vpack.c.b16 %v258, %v258
        %vm269 = vcmask 293888
        %v271 = vsel %vm269, %v243, 0
        %vm273 = vcmask 1041408
        %v275 = vsel %vm273, %v263, 0
        %v278 = vsel %vm273, %v264, 0
        %280 = vmatprep.subr.bf16.mxu0 %v260
        %281 = vmatpush1.bf16.msra.mxu0 %v259
        %282 = vmatprep.subr.bf16.mxu0 %v262
        %283 = vmatpush1.bf16.msra.mxu0 %v261
        %284 = vmatprep.subr.bf16.mxu0 %v278
        %285 = vmatpush1.bf16.msra.mxu0 %v275
        %286 = vmatprep.subr.bf16.mxu0 0
        %287 = vmatpush1.bf16.msra.mxu0 0
        %288 = vmatprep.subr.bf16.mxu0 0
        %289 = vmatpush1.bf16.msra.mxu0 0
        %290 = vmatprep.subr.bf16.mxu0 0
        %291 = vmatpush1.bf16.msra.mxu0 0
        %292 = vmatprep.subr.bf16.mxu0 0
        %293 = vmatpush1.bf16.msra.mxu0 0
        %294 = vmatprep.subr.bf16.mxu0 0
        %295 = vmatpush1.bf16.msra.mxu0 0
        %296 = vmatprep.subr.bf16.mxu0 0
        %297 = vmatpush1.bf16.msra.mxu0 0
        %298 = vmatprep.subr.bf16.mxu0 0
        %299 = vmatpush1.bf16.msra.mxu0 0
        %300 = vmatprep.subr.bf16.mxu0 0
        %301 = vmatpush1.bf16.msra.mxu0 0
        %302 = vmatprep.subr.bf16.mxu0 0
        %303 = vmatpush1.bf16.msra.mxu0 0
        %304 = vmatprep.subr.bf16.mxu0 0
        %305 = vmatpush1.bf16.msra.mxu0 0
        %306 = vmatprep.subr.bf16.mxu0 0
        %307 = vmatpush1.bf16.msra.mxu0 0
        %308 = vmatprep.subr.bf16.mxu0 0
        %309 = vmatpush1.bf16.msra.mxu0 0
        %310 = vmatprep.subr.bf16.mxu0 0
        %311 = vmatpush1.bf16.msra.mxu0 0
        %312 = vmatprep.mubr.bf16.mxu0 0
        %313 = vmatmul.mubr.bf16.gmra.mrb[0].mxu0 %v271
        %v314 = vpop.f32.mrb[0].mxu0
        %v315 = vadd.f32 %v232, %v314
        %v316 = vpop.f32.mrb[0].mxu0
        %v317 = vadd.f32 %v232, %v316
        %v318 = vpop.f32.mrb[0].mxu0
        %v319 = vadd.f32 %v237, %v318
        %v320 = vpop.f32.mrb[0].mxu0
        %v321 = vadd.f32 %v237, %v320
        %322 = vdwg.mxu0
        %s323 = sld [smem:[#allocation2]]
        %vm324 = vcmp.gt.f32.partialorder %v315, 0.0
        %vm325 = vcmp.gt.f32.partialorder %v317, 0.0
        %v326 = vstv %s323
        %v327 = vmul.f32 %v326, %v315
        %v328 = vmul.f32 %v326, %v317
        %v329 = vsel %vm324, %v315, %v327
        %v330 = vsel %vm325, %v317, %v328
        %v331 = vadd.f32 %v329, %v319
        %v332 = vadd.f32 %v330, %v321
        %333 = vst [vmem:[%s216] sm:$0xff] %v331
        %334 = vst [vmem:[%s216 + $0x8] sm:$0xff] %v332
        %s335 = sand.u32 %s119, 1
        %s336 = scalar_lea.sflag [#allocation5], %s335
        %s337 = sand.u32 %s119, 1
        %s338 = smul.addr %s337, 16
        %s339 = scalar_lea.vmem [#allocation6], %s338
        // Predicated region
        $region41: #{tpu_custom_call.1} parent=35 // pred_check
          %p340 = pneg %p129
        $region42: #{tpu_custom_call.1} parent=35 // pred_check_branch
          %342 = sbr.rel (%p340) target = $region44
        $region43: #{tpu_custom_call.1} parent=35 // pred_region
          %s343 = smul.u32 2, %s22
          %s345 = ssub.s32 256, 256
          %346 = vsyncadd %s336, %s345
          %s347 = smul.addr %s343, 128
          %s348 = scalar_lea.hbm %s4, %s347
          %s350 = sshll.u32 %s339, 4
          %s351 = int_to_ptr.vmem [resolvable:$true] %s350
          %353 = dma.vmem_to_hbm [thread:$0]  %s351, 256, %s348, %s336
        $region44: #{tpu_custom_call.1} parent=35 // pred_fallthru
          _
      $region36: #{tpu_custom_call.1} parent=5 // pred_fallthru
        _
      %p354 = scmp.le.s32.totalorder 2, %s17
      // Predicated region
      $region45: #{tpu_custom_call.1} parent=5 // pred_check
        %p355 = pneg %p354
      $region46: #{tpu_custom_call.1} parent=5 // pred_check_branch
        %357 = sbr.rel (%p355) target = $region48
      $region47: #{tpu_custom_call.1} parent=5 // pred_region
        %s358 = ssub.s32 %s17, 2
        // Predicated region
        $region49: #{tpu_custom_call.1} parent=47 // pred_check
          %p359 = pneg %p135
        $region50: #{tpu_custom_call.1} parent=47 // pred_check_branch
          %361 = sbr.rel (%p359) target = $region52
        $region51: #{tpu_custom_call.1} parent=47 // pred_region
          %s362 = sand.u32 %s120, 1
          %s363 = scalar_lea.sflag [#allocation5], %s362
          %s364 = sand.u32 %s120, 1
          %s365 = smul.addr %s364, 16
          %s366 = scalar_lea.vmem [#allocation6], %s365
          %367 = dma.done %s363, 256
        $region52: #{tpu_custom_call.1} parent=47 // pred_fallthru
          _
      $region48: #{tpu_custom_call.1} parent=5 // pred_fallthru
        _
    $region6: #{tpu_custom_call.1} parent=1 // loop_footer
      %s21 = sadd.s32 1, %s17
    $region7: #{tpu_custom_call.1} parent=1 // loop_footer_branch
      %16 = sbr.rel target = $region3
    $region8: #{tpu_custom_call.1} parent=1 // loop_exit
      _
    %368 = vsyncpa [#allocation4], 1
    %s369 = scalar_lea.sflag [#allocation4], 1
    %370 = vsyncpa %s369, 1
    %371 = vsyncpa [#allocation5], 1
    %s372 = scalar_lea.sflag [#allocation5], 1
    %373 = vsyncpa %s372, 1

</llo_original>
